<compile_context>
chip_gen: v5e
topology: v5e:2x2
jax: 0.10.0
libtpu: 0.0.40
codegen_flags: <defaults>
</compile_context>

<pallas_src>
import functools
import math

import jax
import jax.numpy as jnp
from jax.experimental import pallas as pl
from jax.experimental.pallas import tpu as pltpu


def _pick_tile(dim, candidates):
    """Largest candidate tile that divides `dim`, else the full dim."""
    for c in candidates:
        if dim >= c and dim % c == 0:
            return c
    return dim


# ----------------------------------------------------------------------------
# Kernel 1: fused QKV projection, K-tiled over d_model, head-split outputs.
# (qk_scale is already folded into wq/bq and wk/bk by the wrapper.)
# ----------------------------------------------------------------------------
def _qkv_proj_kernel(x_ref, w_ref, b_ref, q_ref, k_ref, v_ref, acc_ref, *,
                     n_heads, d_qk, d_v):
    """x_ref: (1, ts, tdp); w_ref: (tdp, d_total); b_ref: (1, d_total) f32.
    Outputs already head-split: q_ref/k_ref: (1, H, ts, dh_qk),
    v_ref: (1, H, ts, dh_v).  acc_ref: (ts, d_total) f32 K-axis accumulator."""
    kk = pl.program_id(2)

    @pl.when(kk == 0)
    def _init():
        acc_ref[...] = jnp.zeros_like(acc_ref)

    # Wide lane-dense matmul: one (ts, tdp) @ (tdp, 3*d_attn) MXU op per step.
    x = x_ref[0]
    acc_ref[...] += jnp.dot(x.astype(w_ref.dtype), w_ref[...],
                            preferred_element_type=jnp.float32)

    @pl.when(kk == pl.num_programs(2) - 1)
    def _finalize():
        y = acc_ref[...] + b_ref[...]          # (ts, d_total) f32, bias once
        dh_qk = d_qk // n_heads
        dh_v = d_v // n_heads
        # Head split + (ts, H*dh) -> (H, ts, dh) layout change happens here,
        # once per projection tile (static lane slices, off the matmul loop),
        # so the wrapper needs no extra XLA transpose / HBM round trip and the
        # attention kernel gets head-leading blocks directly.
        for h in range(n_heads):
            q_ref[0, h] = y[:, h * dh_qk:(h + 1) * dh_qk].astype(q_ref.dtype)
            k_ref[0, h] = y[:, d_qk + h * dh_qk:
                            d_qk + (h + 1) * dh_qk].astype(k_ref.dtype)
            v_ref[0, h] = y[:, 2 * d_qk + h * dh_v:
                            2 * d_qk + (h + 1) * dh_v].astype(v_ref.dtype)


# ----------------------------------------------------------------------------
# Kernel 2: flash attention over a triangular (q-tile, k-tile) schedule with a
# fused, merged-head output projection.  qi/ki come from scalar-prefetched
# SMEM lookup tables, so causally dead tiles never enter the grid.
# ----------------------------------------------------------------------------
def _flash_attn_kernel(qi_tbl_ref, ki_tbl_ref, q_ref, k_ref, v_ref, wo_ref,
                       bo_ref, o_ref, m_scr, l_scr, acc_scr, *,
                       block_q, block_k, n_heads):
    """q_ref/k_ref/v_ref: (1, H, tile, d_head); wo_ref: (d_v, D);
    bo_ref: (1, D) f32; o_ref: (1, tq, D).
    Scratch: m_scr/l_scr (H, tq, 1) f32, acc_scr (H, tq, dh_v) f32."""
    t = pl.program_id(1)
    qi = qi_tbl_ref[t]
    ki = ki_tbl_ref[t]
    q_start = qi * block_q
    k_start = ki * block_k

    @pl.when(ki == 0)
    def _init():
        m_scr[...] = jnp.full(m_scr.shape, -jnp.inf, dtype=m_scr.dtype)
        l_scr[...] = jnp.zeros(l_scr.shape, dtype=l_scr.dtype)
        acc_scr[...] = jnp.zeros(acc_scr.shape, dtype=acc_scr.dtype)

    def _accumulate(apply_causal_mask):
        q = q_ref[0]                           # (H, tq, dh_qk)
        k = k_ref[0]                           # (H, tk, dh_qk)
        v = v_ref[0]                           # (H, tk, dh_v)

        # Head-batched scores; contraction on the trailing head dim (no
        # explicit K transpose).
        s = jnp.einsum("hqd,hkd->hqk", q, k,
                       preferred_element_type=jnp.float32)   # (H, tq, tk) f32

        if apply_causal_mask:
            # Only causal-boundary tiles pay the element-level mask.
            q_pos = q_start + jax.lax.broadcasted_iota(
                jnp.int32, (1, block_q, block_k), 1)
            k_pos = k_start + jax.lax.broadcasted_iota(
                jnp.int32, (1, block_q, block_k), 2)
            # Finite large-negative (not -inf): exp never produces NaN.
            s = jnp.where(k_pos <= q_pos, s, -1e30)

        m_prev = m_scr[...]                                   # (H, tq, 1)
        m_new = jnp.maximum(m_prev, jnp.max(s, axis=-1, keepdims=True))
        alpha = jnp.exp(m_prev - m_new)                       # f32 (EUP)
        p = jnp.exp(s - m_new)                                # (H, tq, tk) f32
        l_scr[...] = alpha * l_scr[...] + jnp.sum(p, axis=-1, keepdims=True)
        acc_scr[...] = alpha * acc_scr[...] + jnp.einsum(
            "hqk,hkd->hqd", p.astype(v.dtype), v,
            preferred_element_type=jnp.float32)               # (H, tq, dh_v)
        m_scr[...] = m_new

    # Element-offset tile classification (tq and tk may differ).
    is_full = (k_start + block_k - 1) <= q_start

    @pl.when(is_full)
    def _full_tile():
        _accumulate(False)

    @pl.when(jnp.logical_not(is_full))
    def _boundary_tile():
        _accumulate(True)

    # Last k-tile this q-tile ever sees (triangular schedule ends here).
    last_ki = (q_start + block_q - 1) // block_k

    @pl.when(ki == last_ki)
    def _finalize():
        # Normalize once per q-tile (off the k loop).  approx=True is a further
        # option on v6e/v7x when the EUP slot saturates.
        inv_l = pl.reciprocal(l_scr[...], approx=False)       # (H, tq, 1)
        attn = acc_scr[...] * inv_l                           # (H, tq, dh_v)
        # Merge heads into the lane dim once (static slices, once per q-tile),
        # then ONE full-depth (tq, d_v) @ (d_v, D) matmul for the output
        # projection — no per-head K=dh_v matmuls, no H-sized temporary.
        attn_m = jnp.concatenate([attn[h] for h in range(n_heads)], axis=-1)
        out = jnp.dot(attn_m.astype(wo_ref.dtype), wo_ref[...],
                      preferred_element_type=jnp.float32)     # (tq, D)
        o_ref[0] = (out + bo_ref[...]).astype(o_ref.dtype)


# ----------------------------------------------------------------------------
# Wrapper
# ----------------------------------------------------------------------------
def mhsa_pallas(x, params, *, n_heads, compute_dtype=jnp.float32,
                block_s=None, block_q=None, block_k=None, block_d=None,
                vmem_limit_bytes=52 * 1024 * 1024):
    """x: (B, S, D) float32.  params: dict of wq,bq,wk,bk,wv,bv,wo,bo.

    compute_dtype=jnp.bfloat16 enables bf16 MXU inputs (f32 accumulation and
    f32 softmax) for higher throughput on v6e/v7x.  Defaults target 256-wide
    tiles (v6e/v7x MXU); pass block_q=block_k=128 on v5e.  vmem_limit_bytes is
    kept <= ~52 MiB so the same config fits v7x's 64 MiB VMEM; raise toward
    ~96 MiB on v6e if profiling shows exposed DMA."""
    B, S, D = x.shape
    d_qk = params["wq"].shape[1]
    d_v = params["wv"].shape[1]
    assert d_qk % n_heads == 0 and d_v % n_heads == 0
    dh_qk = d_qk // n_heads
    dh_v = d_v // n_heads
    d_total = 2 * d_qk + d_v
    qk_scale = 1.0 / math.sqrt(math.sqrt(dh_qk))

    # Fold qk_scale into Q/K projection weights + biases once (in f32, before
    # any bf16 cast): (xW + b) * s == x(Ws) + (bs).
    wq = params["wq"] * qk_scale
    bq = params["bq"] * qk_scale
    wk = params["wk"] * qk_scale
    bk = params["bk"] * qk_scale
    wqkv = jnp.concatenate([wq, wk, params["wv"]], axis=1).astype(compute_dtype)
    bqkv = jnp.concatenate([bq, bk, params["bv"]], axis=1).astype(jnp.float32)

    # Tile sizes (fall back to full/small dims for tiny shapes).
    ts = block_s if block_s is not None else _pick_tile(S, (256, 128, 64, 32, 16, 8))
    tq = block_q if block_q is not None else _pick_tile(S, (256, 128, 64, 32, 16, 8))
    tk = block_k if block_k is not None else _pick_tile(S, (256, 128, 64, 32, 16, 8))
    tdp = block_d if block_d is not None else _pick_tile(D, (512, 256, 128))
    assert S % ts == 0 and S % tq == 0 and S % tk == 0 and D % tdp == 0
    # TODO(synk): no ragged-tail handling; the PyTorch module accepts any S.

    n_dp = D // tdp
    nq = S // tq

    # ---- Kernel 1: fused QKV projection (K-tiled) + in-kernel head split ----
    cparams_proj = pltpu.CompilerParams(
        dimension_semantics=("parallel", "parallel", "arbitrary"),
        vmem_limit_bytes=vmem_limit_bytes)

    q_bhsd, k_bhsd, v_bhsd = pl.pallas_call(
        functools.partial(_qkv_proj_kernel, n_heads=n_heads, d_qk=d_qk, d_v=d_v),
        out_shape=(
            jax.ShapeDtypeStruct((B, n_heads, S, dh_qk), compute_dtype),
            jax.ShapeDtypeStruct((B, n_heads, S, dh_qk), compute_dtype),
            jax.ShapeDtypeStruct((B, n_heads, S, dh_v), compute_dtype),
        ),
        grid=(B, S // ts, n_dp),
        in_specs=[
            pl.BlockSpec((1, ts, tdp), lambda b, s, kk: (b, s, kk)),
            # Weight is K-tiled -> pipelined (default double-buffering hides
            # its DMA behind the MXU).
            pl.BlockSpec((tdp, d_total), lambda b, s, kk: (kk, 0)),
            # Bias index never changes: single-buffered.
            pl.BlockSpec((1, d_total), lambda b, s, kk: (0, 0),
                         pipeline_mode=pl.Buffered(1)),
        ],
        out_specs=(
            pl.BlockSpec((1, n_heads, ts, dh_qk), lambda b, s, kk: (b, 0, s, 0)),
            pl.BlockSpec((1, n_heads, ts, dh_qk), lambda b, s, kk: (b, 0, s, 0)),
            pl.BlockSpec((1, n_heads, ts, dh_v), lambda b, s, kk: (b, 0, s, 0)),
        ),
        scratch_shapes=[pltpu.VMEM((ts, d_total), jnp.float32)],
        compiler_params=cparams_proj,
    )(x, wqkv, bqkv)

    # ---- Triangular attention schedule (host-side lookup tables) -------------
    # For q-tile qi only k-tiles 0..last_ki(qi) are causally live; tiles above
    # the diagonal never appear in the grid (no DMA, no step overhead).
    qi_list, ki_list = [], []
    for qi in range(nq):
        last_ki = (qi * tq + tq - 1) // tk
        qi_list.extend([qi] * (last_ki + 1))
        ki_list.extend(range(last_ki + 1))
    qi_tbl = jnp.asarray(qi_list, dtype=jnp.int32)
    ki_tbl = jnp.asarray(ki_list, dtype=jnp.int32)
    n_steps = len(qi_list)

    wo = params["wo"].astype(compute_dtype)     # (d_v, D): merged-head out proj
    bo = params["bo"].astype(jnp.float32)       # (1, D)

    grid_spec = pltpu.PrefetchScalarGridSpec(
        num_scalar_prefetch=2,
        grid=(B, n_steps),
        in_specs=[
            pl.BlockSpec((1, n_heads, tq, dh_qk),
                         lambda b, t, qi_t, ki_t: (b, 0, qi_t[t], 0)),
            pl.BlockSpec((1, n_heads, tk, dh_qk),
                         lambda b, t, qi_t, ki_t: (b, 0, ki_t[t], 0)),
            pl.BlockSpec((1, n_heads, tk, dh_v),
                         lambda b, t, qi_t, ki_t: (b, 0, ki_t[t], 0)),
            # Constant-index weight/bias: single-buffered (halves their VMEM,
            # matters most under v7x's 64 MiB).
            pl.BlockSpec((d_v, D), lambda b, t, qi_t, ki_t: (0, 0),
                         pipeline_mode=pl.Buffered(1)),
            pl.BlockSpec((1, D), lambda b, t, qi_t, ki_t: (0, 0),
                         pipeline_mode=pl.Buffered(1)),
        ],
        out_specs=pl.BlockSpec((1, tq, D),
                               lambda b, t, qi_t, ki_t: (b, qi_t[t], 0)),
        scratch_shapes=[
            pltpu.VMEM((n_heads, tq, 1), jnp.float32),      # running max
            pltpu.VMEM((n_heads, tq, 1), jnp.float32),      # running sum
            pltpu.VMEM((n_heads, tq, dh_v), jnp.float32),   # output accumulator
        ],
    )

    cparams_attn = pltpu.CompilerParams(
        dimension_semantics=("parallel", "arbitrary"),
        vmem_limit_bytes=vmem_limit_bytes)

    out = pl.pallas_call(
        functools.partial(_flash_attn_kernel, block_q=tq, block_k=tk,
                          n_heads=n_heads),
        out_shape=jax.ShapeDtypeStruct((B, S, D), x.dtype),
        grid_spec=grid_spec,
        compiler_params=cparams_attn,
    )(qi_tbl, ki_tbl, q_bhsd, k_bhsd, v_bhsd, wo, bo)
    return out


# ----------------------------------------------------------------------------
# Pure-JAX reference mirroring the PyTorch forward (no cache / pad / hooks)
# ----------------------------------------------------------------------------
def mhsa_reference(x, params, *, n_heads):
    B, S, D = x.shape
    d_attn_qk = params["wq"].shape[1]
    d_head_qk = d_attn_qk // n_heads
    qk_scale = 1.0 / math.sqrt(math.sqrt(d_head_qk))

    Q = x @ params["wq"] + params["bq"]
    K = x @ params["wk"] + params["bk"]
    V = x @ params["wv"] + params["bv"]

    def split(Z):
        b, s, d = Z.shape
        return Z.reshape(b, s, n_heads, d // n_heads)

    Q = split(Q) * qk_scale
    K = split(K) * qk_scale
    V = split(V)

    scores = jnp.einsum("bqhd,bkhd->bhqk", Q, K)
    mask = jnp.tril(jnp.ones((S, S), dtype=bool))[None, None]
    scores = jnp.where(mask, scores, -jnp.inf).astype(jnp.float32)
    attn = jax.nn.softmax(scores, axis=-1).astype(Q.dtype)
    out = jnp.einsum("bhqk,bkhd->bqhd", attn, V)
    out = out.reshape(B, S, -1)
    return out @ params["wo"] + params["bo"]


def make_params(key, d_model, d_attn_qk, d_attn_v):
    """Deterministic synthetic parameters (shapes match the nn.Linear layers)."""
    ks = jax.random.split(key, 8)
    init = lambda k, shape: (0.05 * jax.random.normal(k, shape)).astype(jnp.float32)
    return {
        "wq": init(ks[0], (d_model, d_attn_qk)), "bq": init(ks[1], (1, d_attn_qk)),
        "wk": init(ks[2], (d_model, d_attn_qk)), "bk": init(ks[3], (1, d_attn_qk)),
        "wv": init(ks[4], (d_model, d_attn_v)),  "bv": init(ks[5], (1, d_attn_v)),
        "wo": init(ks[6], (d_attn_v, d_model)),  "bo": init(ks[7], (1, d_model)),
    }


if __name__ == "__main__":
    key = jax.random.PRNGKey(0)

    # --- Test 1: small config (d_model=32, n_heads=4, m_attn=1 -> d_head=8) --
    batch, seq, d_model, n_heads = 2, 8, 32, 4
    kx, kp = jax.random.split(key)
    x = jax.random.normal(kx, (batch, seq, d_model), dtype=jnp.float32)
    params = make_params(kp, d_model, d_model, d_model)
    ref = mhsa_reference(x, params, n_heads=n_heads)

    out = mhsa_pallas(x, params, n_heads=n_heads)
    out = jax.block_until_ready(out)
    assert out.shape == (batch, seq, d_model)
    assert jnp.allclose(out, ref, atol=1e-4, rtol=1e-4), "f32 mismatch vs reference"

    out_bf16 = mhsa_pallas(x, params, n_heads=n_heads, compute_dtype=jnp.bfloat16)
    out_bf16 = jax.block_until_ready(out_bf16)
    assert jnp.allclose(out_bf16, ref, atol=5e-2, rtol=5e-2), "bf16 mismatch vs reference"

    # --- Test 2: multi-tile config exercising the triangular schedule,
    # full/boundary tile classification and the K-tiled projection. -----------
    batch2, seq2, d_model2, n_heads2 = 2, 256, 256, 8
    kx2, kp2 = jax.random.split(jax.random.PRNGKey(1))
    x2 = jax.random.normal(kx2, (batch2, seq2, d_model2), dtype=jnp.float32)
    params2 = make_params(kp2, d_model2, d_model2, d_model2)
    ref2 = mhsa_reference(x2, params2, n_heads=n_heads2)

    out2 = mhsa_pallas(x2, params2, n_heads=n_heads2,
                       block_q=128, block_k=128, block_d=128)
    out2 = jax.block_until_ready(out2)
    assert out2.shape == (batch2, seq2, d_model2)
    assert jnp.allclose(out2, ref2, atol=2e-4, rtol=2e-4), "multi-tile f32 mismatch"

    print("KERNEL_OK")
</pallas_src>

<mosaic_0001>
module attributes {stable_mosaic.version = 11 : i64} {
  func.func @_qkv_proj_kernel(%arg0: i32, %arg1: i32, %arg2: i32, %arg3: memref<1x8x32xf32, #tpu.memory_space<vmem>>, %arg4: memref<32x96xf32, #tpu.memory_space<vmem>>, %arg5: memref<1x96xf32, #tpu.memory_space<vmem>>, %arg6: memref<1x4x8x8xf32, #tpu.memory_space<vmem>>, %arg7: memref<1x4x8x8xf32, #tpu.memory_space<vmem>>, %arg8: memref<1x4x8x8xf32, #tpu.memory_space<vmem>>, %arg9: memref<8x96xf32, #tpu.memory_space<vmem>>) attributes {dimension_semantics = [#tpu.dimension_semantics<parallel>, #tpu.dimension_semantics<parallel>, #tpu.dimension_semantics<arbitrary>], iteration_bounds = array<i64: 2, 1, 1>, scalar_prefetch = 0 : i64, scratch_operands = 1 : i64, tpu.core_type = #tpu.core_type<tc>, window_params = [{transform_indices = @transform_0, window_bounds = array<i64: 1, 8, 32>}, {transform_indices = @transform_1, window_bounds = array<i64: 32, 96>}, {pipeline_mode = #tpu.pipeline_mode<synchronous>, transform_indices = @transform_2, window_bounds = array<i64: 1, 96>}, {transform_indices = @transform_3, window_bounds = array<i64: 1, 4, 8, 8>}, {transform_indices = @transform_4, window_bounds = array<i64: 1, 4, 8, 8>}, {transform_indices = @transform_5, window_bounds = array<i64: 1, 4, 8, 8>}]} {
    %c0_i32 = arith.constant 0 : i32
    %0 = arith.cmpi eq, %arg2, %c0_i32 : i32
    %1 = arith.extui %0 : i1 to i32
    %c0_i32_0 = arith.constant 0 : i32
    %2 = arith.cmpi ne, %1, %c0_i32_0 : i32
    scf.if %2 {
      %cst_11 = arith.constant 0.000000e+00 : f32
      %13 = vector.broadcast %cst_11 : f32 to vector<8x96xf32>
      %c0_12 = arith.constant 0 : index
      %c0_13 = arith.constant 0 : index
      %14 = vector.load %arg9[%c0_12, %c0_13] : memref<8x96xf32, #tpu.memory_space<vmem>>, vector<8x96xf32>
      tpu.vector_store %arg9[%c0_12, %c0_13], %13 {strides = array<i32>} : memref<8x96xf32, #tpu.memory_space<vmem>>, vector<8x96xf32>,
    } else {
    }
    %c0 = arith.constant 0 : index
    %c0_1 = arith.constant 0 : index
    %c0_2 = arith.constant 0 : index
    %3 = vector.load %arg3[%c0, %c0_1, %c0_2] : memref<1x8x32xf32, #tpu.memory_space<vmem>>, vector<1x8x32xf32>
    %4 = vector.shape_cast %3 : vector<1x8x32xf32> to vector<8x32xf32>
    %c0_3 = arith.constant 0 : index
    %c0_4 = arith.constant 0 : index
    %5 = vector.load %arg9[%c0_3, %c0_4] : memref<8x96xf32, #tpu.memory_space<vmem>>, vector<8x96xf32>
    %c0_5 = arith.constant 0 : index
    %c0_6 = arith.constant 0 : index
    %6 = vector.load %arg4[%c0_5, %c0_6] : memref<32x96xf32, #tpu.memory_space<vmem>>, vector<32x96xf32>
    %cst = arith.constant dense<0.000000e+00> : vector<8x96xf32>
    %7 = tpu.matmul %4, %6, %cst {dimension_numbers = #tpu.dot_dimension_numbers<[1], [0], [0], [1], [0, 0, 1, 1], [], []>} : vector<8x32xf32>, vector<32x96xf32>, vector<8x96xf32> -> vector<8x96xf32>
    %8 = arith.addf %5, %7 : vector<8x96xf32>
    %c0_7 = arith.constant 0 : index
    %c0_8 = arith.constant 0 : index
    %9 = vector.load %arg9[%c0_7, %c0_8] : memref<8x96xf32, #tpu.memory_space<vmem>>, vector<8x96xf32>
    tpu.vector_store %arg9[%c0_7, %c0_8], %8 {strides = array<i32>} : memref<8x96xf32, #tpu.memory_space<vmem>>, vector<8x96xf32>,
    %c0_i32_9 = arith.constant 0 : i32
    %10 = arith.cmpi eq, %arg2, %c0_i32_9 : i32
    %11 = arith.extui %10 : i1 to i32
    %c0_i32_10 = arith.constant 0 : i32
    %12 = arith.cmpi ne, %11, %c0_i32_10 : i32
    scf.if %12 {
      %c0_11 = arith.constant 0 : index
      %c0_12 = arith.constant 0 : index
      %13 = vector.load %arg9[%c0_11, %c0_12] : memref<8x96xf32, #tpu.memory_space<vmem>>, vector<8x96xf32>
      %c0_13 = arith.constant 0 : index
      %c0_14 = arith.constant 0 : index
      %14 = vector.load %arg5[%c0_13, %c0_14] : memref<1x96xf32, #tpu.memory_space<vmem>>, vector<1x96xf32>
      %15 = vector.broadcast %14 : vector<1x96xf32> to vector<8x96xf32>
      %16 = arith.addf %13, %15 : vector<8x96xf32>
      %17 = vector.extract_strided_slice %16 {offsets = [0, 0], sizes = [8, 8], strides = [1, 1]} : vector<8x96xf32> to vector<8x8xf32>
      %c0_15 = arith.constant 0 : index
      %c0_16 = arith.constant 0 : index
      %c0_17 = arith.constant 0 : index
      %c0_18 = arith.constant 0 : index
      %18 = vector.load %arg6[%c0_15, %c0_16, %c0_17, %c0_18] : memref<1x4x8x8xf32, #tpu.memory_space<vmem>>, vector<1x1x8x8xf32>
      %19 = vector.shape_cast %18 : vector<1x1x8x8xf32> to vector<8x8xf32>
      %20 = vector.shape_cast %17 : vector<8x8xf32> to vector<1x1x8x8xf32>
      tpu.vector_store %arg6[%c0_15, %c0_16, %c0_17, %c0_18], %20 {strides = array<i32>} : memref<1x4x8x8xf32, #tpu.memory_space<vmem>>, vector<1x1x8x8xf32>,
      %21 = vector.extract_strided_slice %16 {offsets = [0, 32], sizes = [8, 8], strides = [1, 1]} : vector<8x96xf32> to vector<8x8xf32>
      %c0_19 = arith.constant 0 : index
      %c0_20 = arith.constant 0 : index
      %c0_21 = arith.constant 0 : index
      %c0_22 = arith.constant 0 : index
      %22 = vector.load %arg7[%c0_19, %c0_20, %c0_21, %c0_22] : memref<1x4x8x8xf32, #tpu.memory_space<vmem>>, vector<1x1x8x8xf32>
      %23 = vector.shape_cast %22 : vector<1x1x8x8xf32> to vector<8x8xf32>
      %24 = vector.shape_cast %21 : vector<8x8xf32> to vector<1x1x8x8xf32>
      tpu.vector_store %arg7[%c0_19, %c0_20, %c0_21, %c0_22], %24 {strides = array<i32>} : memref<1x4x8x8xf32, #tpu.memory_space<vmem>>, vector<1x1x8x8xf32>,
      %25 = vector.extract_strided_slice %16 {offsets = [0, 64], sizes = [8, 8], strides = [1, 1]} : vector<8x96xf32> to vector<8x8xf32>
      %c0_23 = arith.constant 0 : index
      %c0_24 = arith.constant 0 : index
      %c0_25 = arith.constant 0 : index
      %c0_26 = arith.constant 0 : index
      %26 = vector.load %arg8[%c0_23, %c0_24, %c0_25, %c0_26] : memref<1x4x8x8xf32, #tpu.memory_space<vmem>>, vector<1x1x8x8xf32>
      %27 = vector.shape_cast %26 : vector<1x1x8x8xf32> to vector<8x8xf32>
      %28 = vector.shape_cast %25 : vector<8x8xf32> to vector<1x1x8x8xf32>
      tpu.vector_store %arg8[%c0_23, %c0_24, %c0_25, %c0_26], %28 {strides = array<i32>} : memref<1x4x8x8xf32, #tpu.memory_space<vmem>>, vector<1x1x8x8xf32>,
      %29 = vector.extract_strided_slice %16 {offsets = [0, 8], sizes = [8, 8], strides = [1, 1]} : vector<8x96xf32> to vector<8x8xf32>
      %c0_27 = arith.constant 0 : index
      %c1 = arith.constant 1 : index
      %c0_28 = arith.constant 0 : index
      %c0_29 = arith.constant 0 : index
      %30 = vector.load %arg6[%c0_27, %c1, %c0_28, %c0_29] : memref<1x4x8x8xf32, #tpu.memory_space<vmem>>, vector<1x1x8x8xf32>
      %31 = vector.shape_cast %30 : vector<1x1x8x8xf32> to vector<8x8xf32>
      %32 = vector.shape_cast %29 : vector<8x8xf32> to vector<1x1x8x8xf32>
      tpu.vector_store %arg6[%c0_27, %c1, %c0_28, %c0_29], %32 {strides = array<i32>} : memref<1x4x8x8xf32, #tpu.memory_space<vmem>>, vector<1x1x8x8xf32>,
      %33 = vector.extract_strided_slice %16 {offsets = [0, 40], sizes = [8, 8], strides = [1, 1]} : vector<8x96xf32> to vector<8x8xf32>
      %c0_30 = arith.constant 0 : index
      %c1_31 = arith.constant 1 : index
      %c0_32 = arith.constant 0 : index
      %c0_33 = arith.constant 0 : index
      %34 = vector.load %arg7[%c0_30, %c1_31, %c0_32, %c0_33] : memref<1x4x8x8xf32, #tpu.memory_space<vmem>>, vector<1x1x8x8xf32>
      %35 = vector.shape_cast %34 : vector<1x1x8x8xf32> to vector<8x8xf32>
      %36 = vector.shape_cast %33 : vector<8x8xf32> to vector<1x1x8x8xf32>
      tpu.vector_store %arg7[%c0_30, %c1_31, %c0_32, %c0_33], %36 {strides = array<i32>} : memref<1x4x8x8xf32, #tpu.memory_space<vmem>>, vector<1x1x8x8xf32>,
      %37 = vector.extract_strided_slice %16 {offsets = [0, 72], sizes = [8, 8], strides = [1, 1]} : vector<8x96xf32> to vector<8x8xf32>
      %c0_34 = arith.constant 0 : index
      %c1_35 = arith.constant 1 : index
      %c0_36 = arith.constant 0 : index
      %c0_37 = arith.constant 0 : index
      %38 = vector.load %arg8[%c0_34, %c1_35, %c0_36, %c0_37] : memref<1x4x8x8xf32, #tpu.memory_space<vmem>>, vector<1x1x8x8xf32>
      %39 = vector.shape_cast %38 : vector<1x1x8x8xf32> to vector<8x8xf32>
      %40 = vector.shape_cast %37 : vector<8x8xf32> to vector<1x1x8x8xf32>
      tpu.vector_store %arg8[%c0_34, %c1_35, %c0_36, %c0_37], %40 {strides = array<i32>} : memref<1x4x8x8xf32, #tpu.memory_space<vmem>>, vector<1x1x8x8xf32>,
      %41 = vector.extract_strided_slice %16 {offsets = [0, 16], sizes = [8, 8], strides = [1, 1]} : vector<8x96xf32> to vector<8x8xf32>
      %c0_38 = arith.constant 0 : index
      %c2 = arith.constant 2 : index
      %c0_39 = arith.constant 0 : index
      %c0_40 = arith.constant 0 : index
      %42 = vector.load %arg6[%c0_38, %c2, %c0_39, %c0_40] : memref<1x4x8x8xf32, #tpu.memory_space<vmem>>, vector<1x1x8x8xf32>
      %43 = vector.shape_cast %42 : vector<1x1x8x8xf32> to vector<8x8xf32>
      %44 = vector.shape_cast %41 : vector<8x8xf32> to vector<1x1x8x8xf32>
      tpu.vector_store %arg6[%c0_38, %c2, %c0_39, %c0_40], %44 {strides = array<i32>} : memref<1x4x8x8xf32, #tpu.memory_space<vmem>>, vector<1x1x8x8xf32>,
      %45 = vector.extract_strided_slice %16 {offsets = [0, 48], sizes = [8, 8], strides = [1, 1]} : vector<8x96xf32> to vector<8x8xf32>
      %c0_41 = arith.constant 0 : index
      %c2_42 = arith.constant 2 : index
      %c0_43 = arith.constant 0 : index
      %c0_44 = arith.constant 0 : index
      %46 = vector.load %arg7[%c0_41, %c2_42, %c0_43, %c0_44] : memref<1x4x8x8xf32, #tpu.memory_space<vmem>>, vector<1x1x8x8xf32>
      %47 = vector.shape_cast %46 : vector<1x1x8x8xf32> to vector<8x8xf32>
      %48 = vector.shape_cast %45 : vector<8x8xf32> to vector<1x1x8x8xf32>
      tpu.vector_store %arg7[%c0_41, %c2_42, %c0_43, %c0_44], %48 {strides = array<i32>} : memref<1x4x8x8xf32, #tpu.memory_space<vmem>>, vector<1x1x8x8xf32>,
      %49 = vector.extract_strided_slice %16 {offsets = [0, 80], sizes = [8, 8], strides = [1, 1]} : vector<8x96xf32> to vector<8x8xf32>
      %c0_45 = arith.constant 0 : index
      %c2_46 = arith.constant 2 : index
      %c0_47 = arith.constant 0 : index
      %c0_48 = arith.constant 0 : index
      %50 = vector.load %arg8[%c0_45, %c2_46, %c0_47, %c0_48] : memref<1x4x8x8xf32, #tpu.memory_space<vmem>>, vector<1x1x8x8xf32>
      %51 = vector.shape_cast %50 : vector<1x1x8x8xf32> to vector<8x8xf32>
      %52 = vector.shape_cast %49 : vector<8x8xf32> to vector<1x1x8x8xf32>
      tpu.vector_store %arg8[%c0_45, %c2_46, %c0_47, %c0_48], %52 {strides = array<i32>} : memref<1x4x8x8xf32, #tpu.memory_space<vmem>>, vector<1x1x8x8xf32>,
      %53 = vector.extract_strided_slice %16 {offsets = [0, 24], sizes = [8, 8], strides = [1, 1]} : vector<8x96xf32> to vector<8x8xf32>
      %c0_49 = arith.constant 0 : index
      %c3 = arith.constant 3 : index
      %c0_50 = arith.constant 0 : index
      %c0_51 = arith.constant 0 : index
      %54 = vector.load %arg6[%c0_49, %c3, %c0_50, %c0_51] : memref<1x4x8x8xf32, #tpu.memory_space<vmem>>, vector<1x1x8x8xf32>
      %55 = vector.shape_cast %54 : vector<1x1x8x8xf32> to vector<8x8xf32>
      %56 = vector.shape_cast %53 : vector<8x8xf32> to vector<1x1x8x8xf32>
      tpu.vector_store %arg6[%c0_49, %c3, %c0_50, %c0_51], %56 {strides = array<i32>} : memref<1x4x8x8xf32, #tpu.memory_space<vmem>>, vector<1x1x8x8xf32>,
      %57 = vector.extract_strided_slice %16 {offsets = [0, 56], sizes = [8, 8], strides = [1, 1]} : vector<8x96xf32> to vector<8x8xf32>
      %c0_52 = arith.constant 0 : index
      %c3_53 = arith.constant 3 : index
      %c0_54 = arith.constant 0 : index
      %c0_55 = arith.constant 0 : index
      %58 = vector.load %arg7[%c0_52, %c3_53, %c0_54, %c0_55] : memref<1x4x8x8xf32, #tpu.memory_space<vmem>>, vector<1x1x8x8xf32>
      %59 = vector.shape_cast %58 : vector<1x1x8x8xf32> to vector<8x8xf32>
      %60 = vector.shape_cast %57 : vector<8x8xf32> to vector<1x1x8x8xf32>
      tpu.vector_store %arg7[%c0_52, %c3_53, %c0_54, %c0_55], %60 {strides = array<i32>} : memref<1x4x8x8xf32, #tpu.memory_space<vmem>>, vector<1x1x8x8xf32>,
      %61 = vector.extract_strided_slice %16 {offsets = [0, 88], sizes = [8, 8], strides = [1, 1]} : vector<8x96xf32> to vector<8x8xf32>
      %c0_56 = arith.constant 0 : index
      %c3_57 = arith.constant 3 : index
      %c0_58 = arith.constant 0 : index
      %c0_59 = arith.constant 0 : index
      %62 = vector.load %arg8[%c0_56, %c3_57, %c0_58, %c0_59] : memref<1x4x8x8xf32, #tpu.memory_space<vmem>>, vector<1x1x8x8xf32>
      %63 = vector.shape_cast %62 : vector<1x1x8x8xf32> to vector<8x8xf32>
      %64 = vector.shape_cast %61 : vector<8x8xf32> to vector<1x1x8x8xf32>
      tpu.vector_store %arg8[%c0_56, %c3_57, %c0_58, %c0_59], %64 {strides = array<i32>} : memref<1x4x8x8xf32, #tpu.memory_space<vmem>>, vector<1x1x8x8xf32>,
    } else {
    }
    return
  }
  func.func @transform_0(%arg0: i32, %arg1: i32, %arg2: i32) -> (i32, i32, i32) {
    %c0_i32 = arith.constant 0 : i32
    return %arg0, %arg1, %arg2 : i32, i32, i32
  }
  func.func @transform_1(%arg0: i32, %arg1: i32, %arg2: i32) -> (i32, i32) {
    %c0_i32 = arith.constant 0 : i32
    %c0_i32_0 = arith.constant 0 : i32
    return %arg2, %c0_i32 : i32, i32
  }
  func.func @transform_2(%arg0: i32, %arg1: i32, %arg2: i32) -> (i32, i32) {
    %c0_i32 = arith.constant 0 : i32
    %c0_i32_0 = arith.constant 0 : i32
    %c0_i32_1 = arith.constant 0 : i32
    return %c0_i32, %c0_i32_0 : i32, i32
  }
  func.func @transform_3(%arg0: i32, %arg1: i32, %arg2: i32) -> (i32, i32, i32, i32) {
    %c0_i32 = arith.constant 0 : i32
    %c0_i32_0 = arith.constant 0 : i32
    %c0_i32_1 = arith.constant 0 : i32
    return %arg0, %c0_i32, %arg1, %c0_i32_0 : i32, i32, i32, i32
  }
  func.func @transform_4(%arg0: i32, %arg1: i32, %arg2: i32) -> (i32, i32, i32, i32) {
    %c0_i32 = arith.constant 0 : i32
    %c0_i32_0 = arith.constant 0 : i32
    %c0_i32_1 = arith.constant 0 : i32
    return %arg0, %c0_i32, %arg1, %c0_i32_0 : i32, i32, i32, i32
  }
  func.func @transform_5(%arg0: i32, %arg1: i32, %arg2: i32) -> (i32, i32, i32, i32) {
    %c0_i32 = arith.constant 0 : i32
    %c0_i32_0 = arith.constant 0 : i32
    %c0_i32_1 = arith.constant 0 : i32
    return %arg0, %c0_i32, %arg1, %c0_i32_0 : i32, i32, i32, i32
  }
}

</mosaic_0001>

<llo_original>
// kernel: tpu_custom_call.1
$region0: #{tpu_custom_call.1}
  #allocation0 [shape = 'u32[]', space=smem, size = 0x4, offset = 0x4, fixed_abs, tag = 'smem constant byte address 0x4 - core index']
  #allocation1 [shape = 'u32[72,128]{1,0:T(1,128)}', space=vmem, size = 0x9000, scoped, tag = 'internal scratch']
  #allocation2 [shape = 'f32[8,96]{1,0:T(8,128)}', space=vmem, size = 0x1000, scoped, tag = 'scratch operand']
  %s0 = inlined_call_operand.hbm [shape: f32[2,8,32], index: 0, kind: input, shape index: {}]
  %s1 = inlined_call_operand.hbm [shape: f32[32,96], index: 1, kind: input, shape index: {}]
  %s2 = inlined_call_operand.vmem [shape: f32[1,96], index: 2, kind: input, shape index: {}]
  %s3 = inlined_call_operand.hbm [shape: f32[2,4,8,8], index: 3, kind: output, shape index: {0}]
  %s4 = inlined_call_operand.hbm [shape: f32[2,4,8,8], index: 4, kind: output, shape index: {1}]
  %s5 = inlined_call_operand.hbm [shape: f32[2,4,8,8], index: 5, kind: output, shape index: {2}]
  %6 = xla_tuple %s3, %s4, %s5
  %s7 = sld [smem:[#allocation0]]
  $region77: #{tpu_custom_call.1} parent=0
    _
  %s9 = ssub.s32 1, %s7
  %s10 = scalar_select 0, %s9, %s7
  $region1: #{tpu_custom_call.1} parent=0
    #allocation3 [shape = 'u8[8192]{0}', space=vmem, size = 0x2000, scoped, tag = 'input window, operand 0']
    #allocation4 [shape = 's32[2]{0}', space=sflag, size = 0x8, scoped, tag = 'scoped memory for tpu_custom_call.1']
    #allocation5 [shape = 's32[2]{0}', space=sflag, size = 0x8, scoped, tag = 'scoped memory for tpu_custom_call.1']
    #allocation6 [shape = 'u8[16384]{0}', space=vmem, size = 0x4000, scoped, tag = 'input window, operand 1, single buffered']
    #allocation7 [shape = 's32[1]{0}', space=sflag, size = 0x4, scoped, tag = 'scoped memory for tpu_custom_call.1']
    #allocation8 [shape = 'u8[32768]{0}', space=vmem, size = 0x8000, scoped, tag = 'output window, operand 0']
    #allocation9 [shape = 'u8[32768]{0}', space=vmem, size = 0x8000, scoped, tag = 'output window, operand 1']
    #allocation10 [shape = 's32[2]{0}', space=sflag, size = 0x8, scoped, tag = 'scoped memory for tpu_custom_call.1']
    #allocation11 [shape = 'u8[32768]{0}', space=vmem, size = 0x8000, scoped, tag = 'output window, operand 2']
    %11 = vsyncpa [#allocation4], 0
    %s12 = scalar_lea.sflag [#allocation4], 1
    %13 = vsyncpa %s12, 0
    %14 = vsyncpa [#allocation7], 0
    %15 = vsyncpa [#allocation5], 0
    %s16 = scalar_lea.sflag [#allocation5], 1
    %17 = vsyncpa %s16, 0
    %18 = vsyncpa [#allocation10], 0
    %s19 = scalar_lea.sflag [#allocation10], 1
    %20 = vsyncpa %s19, 0
    loop: start=0, step=1, limit=4
    $region2: #{tpu_custom_call.1} parent=1 // loop_pre_header
      _
    $region3: #{tpu_custom_call.1} parent=1 // loop_header
      %s22 = sphi 0, %s26
      %p23 = scmp.ge.s32.totalorder %s22, 4
      %s29 = sphi 0, %s48
      %s30 = sphi 0, %s44
      %s31 = sphi 0, %s40
      %s32 = sphi 0, %s29
      %s33 = sphi 0, %s30
      %s34 = sphi 0, %s31
      %s35 = sphi 0, %s32
      %s36 = sphi 0, %s33
      %s37 = sphi 0, %s34
      %s55 = sphi 0, %s57
      %s58 = sphi 0, %s55
      %s59 = sphi 0, %s58
      %s75 = sphi 0, %s59
      %s81 = sphi 0, %s83
      %s84 = sphi 0, %s81
      %s85 = sphi 0, %s84
      %s101 = sphi 0, %s85
      %s105 = sphi 0, %s105
      %s107 = sphi 0, %s105
      %s108 = sphi 0, %s107
      %s122 = sphi 0, %s108
      %s130 = sphi 0, %s132
      %s133 = sphi 0, %s130
      %s134 = sphi 0, %s133
      %s150 = sphi 0, %s134
      %s158 = sphi 0, %s160
      %s161 = sphi 0, %s158
      %s162 = sphi 0, %s161
      %s178 = sphi 0, %s162
      %s186 = sphi 0, %s188
      %s189 = sphi 0, %s186
      %s190 = sphi 0, %s189
      %s206 = sphi 0, %s190
    $region4: #{tpu_custom_call.1} parent=1 // loop_header_branch
      %25 = sbr.rel (%p23) target = $region8
    $region5: #{tpu_custom_call.1} parent=1 // loop_body
      %s27 = ssub.s32 %s22, 1
      %s28 = ssub.s32 %s22, 2
      %s38 = sadd.s32 1, %s31
      %p39 = scmp.ge.s32.totalorder %s38, 1
      %s40 = scalar_select %p39, 0, %s38
      %s41 = sadd.s32 1, %s30
      %s42 = scalar_select %p39, %s41, %s30
      %p43 = scmp.ge.s32.totalorder %s42, 1
      %s44 = scalar_select %p43, 0, %s42
      %s45 = sadd.s32 1, %s29
      %s46 = scalar_select %p43, %s45, %s29
      %p47 = scmp.ge.s32.totalorder %s46, 2
      %s48 = scalar_select %p47, 0, %s46
      %s49 = ssub.s32 %s29, %s48
      %s50 = ssub.s32 %s30, %s44
      %s51 = sor.u32 %s49, %s50
      %s52 = ssub.s32 %s31, %s40
      %s53 = sor.u32 %s51, %s52
      %p54 = scmp.eq.s32.totalorder %s53, 0
      %s56 = sadd.s32 %s55, 1
      %s57 = scalar_select %p54, %s55, %s56
      %p60 = pneg %p54
      %p61 = scmp.eq.s32.totalorder %s22, 1
      %p62 = por %p60, %p61
      %p63 = scmp.ne.s32.totalorder %s55, %s58
      %p64 = scmp.eq.s32.totalorder %s22, 0
      %p65 = por %p63, %p64
      %p66 = scmp.ne.s32.totalorder %s55, %s58
      %p67 = scmp.eq.s32.totalorder %s27, 1
      %p68 = por %p66, %p67
      %p69 = scmp.ne.s32.totalorder %s58, %s59
      %p70 = scmp.eq.s32.totalorder %s27, 0
      %p71 = por %p69, %p70
      %p72 = scmp.ne.s32.totalorder %s58, %s59
      %p73 = scmp.eq.s32.totalorder %s28, 1
      %p74 = por %p72, %p73
      %p76 = scmp.ne.s32.totalorder %s59, %s75
      %p77 = scmp.eq.s32.totalorder %s28, 0
      %p78 = por %p76, %p77
      %s79 = ssub.s32 %s31, %s40
      %p80 = scmp.eq.s32.totalorder %s79, 0
      %s82 = sadd.s32 %s81, 1
      %s83 = scalar_select %p80, %s81, %s82
      %p86 = pneg %p80
      %p87 = scmp.eq.s32.totalorder %s22, 1
      %p88 = por %p86, %p87
      %p89 = scmp.ne.s32.totalorder %s81, %s84
      %p90 = scmp.eq.s32.totalorder %s22, 0
      %p91 = por %p89, %p90
      %p92 = scmp.ne.s32.totalorder %s81, %s84
      %p93 = scmp.eq.s32.totalorder %s27, 1
      %p94 = por %p92, %p93
      %p95 = scmp.ne.s32.totalorder %s84, %s85
      %p96 = scmp.eq.s32.totalorder %s27, 0
      %p97 = por %p95, %p96
      %p98 = scmp.ne.s32.totalorder %s84, %s85
      %p99 = scmp.eq.s32.totalorder %s28, 1
      %p100 = por %p98, %p99
      %p102 = scmp.ne.s32.totalorder %s85, %s101
      %p103 = scmp.eq.s32.totalorder %s28, 0
      %p104 = por %p102, %p103
      %s106 = sadd.s32 %s105, 1
      %p109 = scmp.eq.s32.totalorder %s22, 1
      %p110 = scmp.ne.s32.totalorder %s105, %s107
      %p111 = scmp.eq.s32.totalorder %s22, 0
      %p112 = por %p110, %p111
      %p113 = scmp.ne.s32.totalorder %s105, %s107
      %p114 = scmp.eq.s32.totalorder %s27, 1
      %p115 = por %p113, %p114
      %p116 = scmp.ne.s32.totalorder %s107, %s108
      %p117 = scmp.eq.s32.totalorder %s27, 0
      %p118 = por %p116, %p117
      %p119 = scmp.ne.s32.totalorder %s107, %s108
      %p120 = scmp.eq.s32.totalorder %s28, 1
      %p121 = por %p119, %p120
      %p123 = scmp.ne.s32.totalorder %s108, %s122
      %p124 = scmp.eq.s32.totalorder %s28, 0
      %p125 = por %p123, %p124
      %s126 = ssub.s32 %s29, %s48
      %s127 = ssub.s32 %s30, %s44
      %s128 = sor.u32 %s126, %s127
      %p129 = scmp.eq.s32.totalorder %s128, 0
      %s131 = sadd.s32 %s130, 1
      %s132 = scalar_select %p129, %s130, %s131
      %p135 = pneg %p129
      %p136 = scmp.eq.s32.totalorder %s22, 1
      %p137 = por %p135, %p136
      %p138 = scmp.ne.s32.totalorder %s130, %s133
      %p139 = scmp.eq.s32.totalorder %s22, 0
      %p140 = por %p138, %p139
      %p141 = scmp.ne.s32.totalorder %s130, %s133
      %p142 = scmp.eq.s32.totalorder %s27, 1
      %p143 = por %p141, %p142
      %p144 = scmp.ne.s32.totalorder %s133, %s134
      %p145 = scmp.eq.s32.totalorder %s27, 0
      %p146 = por %p144, %p145
      %p147 = scmp.ne.s32.totalorder %s133, %s134
      %p148 = scmp.eq.s32.totalorder %s28, 1
      %p149 = por %p147, %p148
      %p151 = scmp.ne.s32.totalorder %s134, %s150
      %p152 = scmp.eq.s32.totalorder %s28, 0
      %p153 = por %p151, %p152
      %s154 = ssub.s32 %s29, %s48
      %s155 = ssub.s32 %s30, %s44
      %s156 = sor.u32 %s154, %s155
      %p157 = scmp.eq.s32.totalorder %s156, 0
      %s159 = sadd.s32 %s158, 1
      %s160 = scalar_select %p157, %s158, %s159
      %p163 = pneg %p157
      %p164 = scmp.eq.s32.totalorder %s22, 1
      %p165 = por %p163, %p164
      %p166 = scmp.ne.s32.totalorder %s158, %s161
      %p167 = scmp.eq.s32.totalorder %s22, 0
      %p168 = por %p166, %p167
      %p169 = scmp.ne.s32.totalorder %s158, %s161
      %p170 = scmp.eq.s32.totalorder %s27, 1
      %p171 = por %p169, %p170
      %p172 = scmp.ne.s32.totalorder %s161, %s162
      %p173 = scmp.eq.s32.totalorder %s27, 0
      %p174 = por %p172, %p173
      %p175 = scmp.ne.s32.totalorder %s161, %s162
      %p176 = scmp.eq.s32.totalorder %s28, 1
      %p177 = por %p175, %p176
      %p179 = scmp.ne.s32.totalorder %s162, %s178
      %p180 = scmp.eq.s32.totalorder %s28, 0
      %p181 = por %p179, %p180
      %s182 = ssub.s32 %s29, %s48
      %s183 = ssub.s32 %s30, %s44
      %s184 = sor.u32 %s182, %s183
      %p185 = scmp.eq.s32.totalorder %s184, 0
      %s187 = sadd.s32 %s186, 1
      %s188 = scalar_select %p185, %s186, %s187
      %p191 = pneg %p185
      %p192 = scmp.eq.s32.totalorder %s22, 1
      %p193 = por %p191, %p192
      %p194 = scmp.ne.s32.totalorder %s186, %s189
      %p195 = scmp.eq.s32.totalorder %s22, 0
      %p196 = por %p194, %p195
      %p197 = scmp.ne.s32.totalorder %s186, %s189
      %p198 = scmp.eq.s32.totalorder %s27, 1
      %p199 = por %p197, %p198
      %p200 = scmp.ne.s32.totalorder %s189, %s190
      %p201 = scmp.eq.s32.totalorder %s27, 0
      %p202 = por %p200, %p201
      %p203 = scmp.ne.s32.totalorder %s189, %s190
      %p204 = scmp.eq.s32.totalorder %s28, 1
      %p205 = por %p203, %p204
      %p207 = scmp.ne.s32.totalorder %s190, %s206
      %p208 = scmp.eq.s32.totalorder %s28, 0
      %p209 = por %p207, %p208
      %p210 = scmp.le.s32.totalorder 1, %s22
      %p211 = scmp.lt.s32.totalorder %s22, 3
      %p212 = pnand %p210, %p211
      %p213 = pneg %p212
      // Predicated region
      $region9: #{tpu_custom_call.1} parent=5 // pred_check
        _
      $region10: #{tpu_custom_call.1} parent=5 // pred_check_branch
        %215 = sbr.rel (%p212) target = $region12
      $region11: #{tpu_custom_call.1} parent=5 // pred_region
        %s216 = ssub.s32 %s22, 1
        // Predicated region
        $region13: #{tpu_custom_call.1} parent=11 // pred_check
          %p217 = pneg %p97
        $region14: #{tpu_custom_call.1} parent=11 // pred_check_branch
          %219 = sbr.rel (%p217) target = $region16
        $region15: #{tpu_custom_call.1} parent=11 // pred_region
          %s220 = smul.u32 4, %s34
          %222 = vsyncadd [#allocation7], 0
          %s223 = smul.addr %s220, 8
          %s224 = scalar_lea.hbm %s1, %s223
          %s225 = sshll.u32 %s224, 4
          %s226 = int_to_ptr.hbm [resolvable:$true] %s225
          %s227 = sshll.u32 [#allocation6], 4
          %s228 = int_to_ptr.vmem [resolvable:$true] %s227
          %233 = dma.hbm_to_vmem [thread:$0]  %s226, 512, %s228, [#allocation7], 128, 128, 8
        $region16: #{tpu_custom_call.1} parent=11 // pred_fallthru
          _
        // Predicated region
        $region17: #{tpu_custom_call.1} parent=11 // pred_check
          %p234 = pneg %p118
        $region18: #{tpu_custom_call.1} parent=11 // pred_check_branch
          %236 = sbr.rel (%p234) target = $region20
        $region19: #{tpu_custom_call.1} parent=11 // pred_region
          _
        $region20: #{tpu_custom_call.1} parent=11 // pred_fallthru
          _
      $region12: #{tpu_custom_call.1} parent=5 // pred_fallthru
        _
      %p237 = scmp.lt.s32.totalorder %s22, 2
      // Predicated region
      $region21: #{tpu_custom_call.1} parent=5 // pred_check
        %p238 = pneg %p237
      $region22: #{tpu_custom_call.1} parent=5 // pred_check_branch
        %240 = sbr.rel (%p238) target = $region24
      $region23: #{tpu_custom_call.1} parent=5 // pred_region
        // Predicated region
        $region25: #{tpu_custom_call.1} parent=23 // pred_check
          %p241 = pneg %p65
        $region26: #{tpu_custom_call.1} parent=23 // pred_check_branch
          %243 = sbr.rel (%p241) target = $region28
        $region27: #{tpu_custom_call.1} parent=23 // pred_region
          %s244 = sand.u32 %s55, 1
          %s245 = scalar_lea.sflag [#allocation4], %s244
          %s246 = sand.u32 %s55, 1
          %s247 = smul.addr %s246, 8
          %s248 = scalar_lea.vmem [#allocation3], %s247
          %250 = vsyncadd %s245, 0
          %s251 = sadd.s32 %s31, %s30
          %s252 = sadd.s32 %s251, %s29
          %s253 = smul.addr %s252, 8
          %s254 = scalar_lea.hbm %s0, %s253
          %s256 = sshll.u32 %s254, 4
          %s257 = int_to_ptr.hbm [resolvable:$true] %s256
          %s258 = sshll.u32 %s248, 4
          %s259 = int_to_ptr.vmem [resolvable:$true] %s258
          %261 = dma.hbm_to_vmem [thread:$0]  %s257, 128, %s259, %s245
        $region28: #{tpu_custom_call.1} parent=23 // pred_fallthru
          _
      $region24: #{tpu_custom_call.1} parent=5 // pred_fallthru
        _
      %p262 = scmp.le.s32.totalorder 1, %s22
      %p263 = scmp.lt.s32.totalorder %s22, 3
      %p264 = pnand %p262, %p263
      %p265 = pneg %p264
      // Predicated region
      $region29: #{tpu_custom_call.1} parent=5 // pred_check
        _
      $region30: #{tpu_custom_call.1} parent=5 // pred_check_branch
        %267 = sbr.rel (%p264) target = $region32
      $region31: #{tpu_custom_call.1} parent=5 // pred_region
        %s268 = ssub.s32 %s22, 1
        %s269 = sand.u32 %s58, 1
        %s270 = scalar_lea.sflag [#allocation4], %s269
        %s271 = sand.u32 %s58, 1
        %s272 = smul.addr %s271, 8
        %s273 = scalar_lea.vmem [#allocation3], %s272
        // Predicated region
        $region33: #{tpu_custom_call.1} parent=31 // pred_check
          %p274 = pneg %p71
        $region34: #{tpu_custom_call.1} parent=31 // pred_check_branch
          %276 = sbr.rel (%p274) target = $region36
        $region35: #{tpu_custom_call.1} parent=31 // pred_region
          %278 = dma.done %s270, 128
        $region36: #{tpu_custom_call.1} parent=31 // pred_fallthru
          _
        // Predicated region
        $region37: #{tpu_custom_call.1} parent=31 // pred_check
          %p279 = pneg %p97
        $region38: #{tpu_custom_call.1} parent=31 // pred_check_branch
          %281 = sbr.rel (%p279) target = $region40
        $region39: #{tpu_custom_call.1} parent=31 // pred_region
          %283 = dma.done [#allocation7], 512
        $region40: #{tpu_custom_call.1} parent=31 // pred_fallthru
          _
        %s284 = sand.u32 %s58, 1
        %s285 = scalar_lea.sflag [#allocation4], %s284
        %s286 = sand.u32 %s58, 1
        %s287 = smul.addr %s286, 8
        %s288 = scalar_lea.vmem [#allocation3], %s287
        %p289 = pneg %p71
        %p290 = pneg %p68
        %p291 = pneg %p97
        %p292 = pneg %p94
        %p293 = pneg %p118
        %p294 = pneg %p115
        %p295 = pneg %p146
        %p296 = pneg %p143
        %s297 = sand.u32 %s133, 1
        %s298 = scalar_lea.sflag [#allocation5], %s297
        %s299 = sand.u32 %s133, 1
        %s300 = smul.addr %s299, 32
        %s301 = scalar_lea.vmem [#allocation8], %s300
        %p302 = pneg %p174
        %p303 = pneg %p171
        %s304 = sand.u32 %s27, 1
        %s305 = scalar_lea.sflag [#allocation10], %s304
        %s306 = sand.u32 %s161, 1
        %s307 = smul.addr %s306, 32
        %s308 = scalar_lea.vmem [#allocation9], %s307
        %p309 = pneg %p202
        %p310 = pneg %p199
        %s311 = sand.u32 %s27, 1
        %s312 = scalar_lea.sflag [#allocation10], %s311
        %s313 = sand.u32 %s189, 1
        %s314 = smul.addr %s313, 32
        %s315 = scalar_lea.vmem [#allocation11], %s314
        %s316 = smul.u32 4, %s34
        %p317 = scmp.eq.s32.totalorder %s34, 0
        // Predicated region
        $region41: #{tpu_custom_call.1} parent=31 // pred_check
          %p318 = pneg %p317
        $region42: #{tpu_custom_call.1} parent=31 // pred_check_branch
          %320 = sbr.rel (%p318) target = $region44
        $region43: #{tpu_custom_call.1} parent=31 // pred_region
          %vm321 = vcmask 785408
          %322 = vst.msk [vmem:[#allocation2] sm:$0xff] %vm321, 0.0
        $region44: #{tpu_custom_call.1} parent=31 // pred_fallthru
          _
        %v323 = vld [vmem:[%s273] sm:$0xff]
        %v324 = vld [vmem:[#allocation2] sm:$0xff]
        %v325 = vld [vmem:[#allocation6] sm:$0xff]
        %v326 = vld [vmem:[#allocation6 + $0x8] sm:$0xff]
        %v327 = vld [vmem:[#allocation6 + $0x10] sm:$0xff]
        %v328 = vld [vmem:[#allocation6 + $0x18] sm:$0xff]
        %vm329 = vcmask 261120
        %v331 = vsel %vm329, %v323, 0
        %333 = vmatpush.msra.mxu0 0.0
        %334 = vmatpush.msra.mxu0 0.0
        %335 = vmatpush.msra.mxu0 0.0
        %336 = vmatpush.msra.mxu0 0.0
        %337 = vmatpush.msra.mxu0 0.0
        %338 = vmatpush.msra.mxu0 0.0
        %339 = vmatpush.msra.mxu0 0.0
        %340 = vmatpush.msra.mxu0 0.0
        %341 = vmatpush.msra.mxu0 0.0
        %342 = vmatpush.msra.mxu0 0.0
        %343 = vmatpush.msra.mxu0 0.0
        %344 = vmatpush.msra.mxu0 0.0
        %345 = vmatpush.msra.mxu0 %v328
        %346 = vmatpush.msra.mxu0 %v327
        %347 = vmatpush.msra.mxu0 %v326
        %348 = vmatpush.msra.mxu0 %v325
        %349 = vmatmul.f32.gmra.mxu0 %v331
        %v350 = vpop.f32.mrf.mxu0
        %v351 = vadd.f32 0.0, %v350
        %352 = vdwg.mxu0
        %v353 = vadd.f32 %v324, %v351
        %vm354 = vcmask 785408
        %355 = vst.msk [vmem:[#allocation2] sm:$0xff] %vm354, %v353
        // Predicated region
        $region45: #{tpu_custom_call.1} parent=31 // pred_check
          %p356 = pneg %p317
        $region46: #{tpu_custom_call.1} parent=31 // pred_check_branch
          %358 = sbr.rel (%p356) target = $region48
        $region47: #{tpu_custom_call.1} parent=31 // pred_region
          %v359 = vld [vmem:[#allocation2] sm:$0xff]
          %v360 = vld [vmem:[%s2] sm:$0x1]
          %v362 = vperm.slane %v360, 0
          %v364 = vadd.f32 %v359, %v362
          %vm365 = vcmask 64512
          %366 = vst.msk [vmem:[%s301] sm:$0xff] %vm365, %v364
          %368 = vrot.lane.b32.xlu0 %v364, 96
          %v369 = vpop.permute.xlu0 %368
          %371 = vst.msk [vmem:[%s308] sm:$0xff] %vm365, %v369
          %372 = vrot.lane.b32.xlu0 %v364, 64
          %v373 = vpop.permute.xlu0 %372
          %375 = vst.msk [vmem:[%s315] sm:$0xff] %vm365, %v373
          %376 = vrot.lane.b32.xlu0 %v364, 120
          %v377 = vpop.permute.xlu0 %376
          %s379 = scalar_lea.vmem %s301, 8 [#allocation8]
          %380 = vst.msk [vmem:[%s379] sm:$0xff] %vm365, %v377
          %381 = vrot.lane.b32.xlu0 %v364, 88
          %v382 = vpop.permute.xlu0 %381
          %s384 = scalar_lea.vmem %s308, 8 [#allocation9]
          %385 = vst.msk [vmem:[%s384] sm:$0xff] %vm365, %v382
          %386 = vrot.lane.b32.xlu0 %v364, 56
          %v387 = vpop.permute.xlu0 %386
          %s389 = scalar_lea.vmem %s315, 8 [#allocation11]
          %390 = vst.msk [vmem:[%s389] sm:$0xff] %vm365, %v387
          %391 = vrot.lane.b32.xlu0 %v364, 112
          %v392 = vpop.permute.xlu0 %391
          %s394 = scalar_lea.vmem %s301, 16 [#allocation8]
          %395 = vst.msk [vmem:[%s394] sm:$0xff] %vm365, %v392
          %396 = vrot.lane.b32.xlu0 %v364, 80
          %v397 = vpop.permute.xlu0 %396
          %s399 = scalar_lea.vmem %s308, 16 [#allocation9]
          %400 = vst.msk [vmem:[%s399] sm:$0xff] %vm365, %v397
          %401 = vrot.lane.b32.xlu0 %v364, 48
          %v402 = vpop.permute.xlu0 %401
          %s404 = scalar_lea.vmem %s315, 16 [#allocation11]
          %405 = vst.msk [vmem:[%s404] sm:$0xff] %vm365, %v402
          %406 = vrot.lane.b32.xlu0 %v364, 104
          %v407 = vpop.permute.xlu0 %406
          %s409 = scalar_lea.vmem %s301, 24 [#allocation8]
          %410 = vst.msk [vmem:[%s409] sm:$0xff] %vm365, %v407
          %411 = vrot.lane.b32.xlu0 %v364, 72
          %v412 = vpop.permute.xlu0 %411
          %s414 = scalar_lea.vmem %s308, 24 [#allocation9]
          %415 = vst.msk [vmem:[%s414] sm:$0xff] %vm365, %v412
          %416 = vrot.lane.b32.xlu0 %v364, 40
          %v417 = vpop.permute.xlu0 %416
          %s419 = scalar_lea.vmem %s315, 24 [#allocation11]
          %420 = vst.msk [vmem:[%s419] sm:$0xff] %vm365, %v417
        $region48: #{tpu_custom_call.1} parent=31 // pred_fallthru
          _
        %s421 = sand.u32 %s133, 1
        %s422 = scalar_lea.sflag [#allocation5], %s421
        %s423 = sand.u32 %s133, 1
        %s424 = smul.addr %s423, 32
        %s425 = scalar_lea.vmem [#allocation8], %s424
        %s426 = sand.u32 %s27, 1
        %s427 = scalar_lea.sflag [#allocation10], %s426
        %s428 = sand.u32 %s161, 1
        %s429 = smul.addr %s428, 32
        %s430 = scalar_lea.vmem [#allocation9], %s429
        %s431 = sand.u32 %s27, 1
        %s432 = scalar_lea.sflag [#allocation10], %s431
        %s433 = sand.u32 %s189, 1
        %s434 = smul.addr %s433, 32
        %s435 = scalar_lea.vmem [#allocation11], %s434
        // Predicated region
        $region49: #{tpu_custom_call.1} parent=31 // pred_check
          %p436 = pneg %p143
        $region50: #{tpu_custom_call.1} parent=31 // pred_check_branch
          %438 = sbr.rel (%p436) target = $region52
        $region51: #{tpu_custom_call.1} parent=31 // pred_region
          %440 = vsyncadd %s422, 0
          %s441 = smul.addr %s32, 4
          %s442 = sadd.s32 %s33, %s441
          %s443 = smul.addr %s442, 8
          %s444 = scalar_lea.hbm %s3, %s443
          %s445 = sshll.u32 %s425, 4
          %s446 = int_to_ptr.vmem [resolvable:$true] %s445
          %s447 = sshll.u32 %s444, 4
          %s448 = int_to_ptr.hbm [resolvable:$true] %s447
          %453 = dma.vmem_to_hbm [thread:$0]  %s446, 512, %s448, %s422, 128, 128, 8
        $region52: #{tpu_custom_call.1} parent=31 // pred_fallthru
          _
        // Predicated region
        $region53: #{tpu_custom_call.1} parent=31 // pred_check
          %p454 = pneg %p171
        $region54: #{tpu_custom_call.1} parent=31 // pred_check_branch
          %456 = sbr.rel (%p454) target = $region56
        $region55: #{tpu_custom_call.1} parent=31 // pred_region
          %458 = vsyncadd %s427, 0
          %s459 = smul.addr %s32, 4
          %s460 = sadd.s32 %s33, %s459
          %s461 = smul.addr %s460, 8
          %s462 = scalar_lea.hbm %s4, %s461
          %s463 = sshll.u32 %s430, 4
          %s464 = int_to_ptr.vmem [resolvable:$true] %s463
          %s465 = sshll.u32 %s462, 4
          %s466 = int_to_ptr.hbm [resolvable:$true] %s465
          %471 = dma.vmem_to_hbm [thread:$0]  %s464, 512, %s466, %s427, 128, 128, 8
        $region56: #{tpu_custom_call.1} parent=31 // pred_fallthru
          _
        // Predicated region
        $region57: #{tpu_custom_call.1} parent=31 // pred_check
          %p472 = pneg %p199
        $region58: #{tpu_custom_call.1} parent=31 // pred_check_branch
          %474 = sbr.rel (%p472) target = $region60
        $region59: #{tpu_custom_call.1} parent=31 // pred_region
          %476 = vsyncadd %s432, 0
          %s477 = smul.addr %s32, 4
          %s478 = sadd.s32 %s33, %s477
          %s479 = smul.addr %s478, 8
          %s480 = scalar_lea.hbm %s5, %s479
          %s481 = sshll.u32 %s435, 4
          %s482 = int_to_ptr.vmem [resolvable:$true] %s481
          %s483 = sshll.u32 %s480, 4
          %s484 = int_to_ptr.hbm [resolvable:$true] %s483
          %489 = dma.vmem_to_hbm [thread:$0]  %s482, 512, %s484, %s432, 128, 128, 8
        $region60: #{tpu_custom_call.1} parent=31 // pred_fallthru
          _
      $region32: #{tpu_custom_call.1} parent=5 // pred_fallthru
        _
      %p490 = scmp.le.s32.totalorder 2, %s22
      // Predicated region
      $region61: #{tpu_custom_call.1} parent=5 // pred_check
        %p491 = pneg %p490
      $region62: #{tpu_custom_call.1} parent=5 // pred_check_branch
        %493 = sbr.rel (%p491) target = $region64
      $region63: #{tpu_custom_call.1} parent=5 // pred_region
        %s494 = ssub.s32 %s22, 2
        // Predicated region
        $region65: #{tpu_custom_call.1} parent=63 // pred_check
          %p495 = pneg %p149
        $region66: #{tpu_custom_call.1} parent=63 // pred_check_branch
          %497 = sbr.rel (%p495) target = $region68
        $region67: #{tpu_custom_call.1} parent=63 // pred_region
          %s498 = sand.u32 %s134, 1
          %s499 = scalar_lea.sflag [#allocation5], %s498
          %s500 = sand.u32 %s134, 1
          %s501 = smul.addr %s500, 32
          %s502 = scalar_lea.vmem [#allocation8], %s501
          %504 = dma.done %s499, 512
        $region68: #{tpu_custom_call.1} parent=63 // pred_fallthru
          _
        // Predicated region
        $region69: #{tpu_custom_call.1} parent=63 // pred_check
          %p505 = pneg %p177
        $region70: #{tpu_custom_call.1} parent=63 // pred_check_branch
          %507 = sbr.rel (%p505) target = $region72
        $region71: #{tpu_custom_call.1} parent=63 // pred_region
          %s508 = sand.u32 %s28, 1
          %s509 = scalar_lea.sflag [#allocation10], %s508
          %s510 = sand.u32 %s162, 1
          %s511 = smul.addr %s510, 32
          %s512 = scalar_lea.vmem [#allocation9], %s511
          %514 = dma.done %s509, 512
        $region72: #{tpu_custom_call.1} parent=63 // pred_fallthru
          _
        // Predicated region
        $region73: #{tpu_custom_call.1} parent=63 // pred_check
          %p515 = pneg %p205
        $region74: #{tpu_custom_call.1} parent=63 // pred_check_branch
          %517 = sbr.rel (%p515) target = $region76
        $region75: #{tpu_custom_call.1} parent=63 // pred_region
          %s518 = sand.u32 %s28, 1
          %s519 = scalar_lea.sflag [#allocation10], %s518
          %s520 = sand.u32 %s190, 1
          %s521 = smul.addr %s520, 32
          %s522 = scalar_lea.vmem [#allocation11], %s521
          %524 = dma.done %s519, 512
        $region76: #{tpu_custom_call.1} parent=63 // pred_fallthru
          _
      $region64: #{tpu_custom_call.1} parent=5 // pred_fallthru
        _
    $region6: #{tpu_custom_call.1} parent=1 // loop_footer
      %s26 = sadd.s32 1, %s22
    $region7: #{tpu_custom_call.1} parent=1 // loop_footer_branch
      %21 = sbr.rel target = $region3
    $region8: #{tpu_custom_call.1} parent=1 // loop_exit
      _
    %525 = vsyncpa [#allocation4], 1
    %s526 = scalar_lea.sflag [#allocation4], 1
    %527 = vsyncpa %s526, 1
    %528 = vsyncpa [#allocation7], 1
    %529 = vsyncpa [#allocation5], 1
    %s530 = scalar_lea.sflag [#allocation5], 1
    %531 = vsyncpa %s530, 1
    %532 = vsyncpa [#allocation10], 1
    %s533 = scalar_lea.sflag [#allocation10], 1
    %534 = vsyncpa %s533, 1

</llo_original>
